<compile_context>
chip_gen: v7x
topology: tpu7x:2x2x1
jax: 0.10.0
libtpu: 0.0.40
codegen_flags: <defaults>
</compile_context>

<pallas_src>
import functools

import jax
import jax.numpy as jnp
from jax.experimental import pallas as pl
from jax.experimental.pallas import tpu as pltpu

# --- Module hyper-parameters (synthetic, deterministic) ----------------------
STATE_DIM = 16
ACTION_DIM = 8
JITTER_FEATURES = 32
JITTER_LAYERS = 2          # number of hidden (ReLU) layers in the MLP
MAX_ACTION = 1.0
PHI = 0.05
BATCH = 8

LANE = 128                 # TPU lane width; hidden feature axes padded to this
W_ROWS = 3 * LANE + 8      # 3 padded 128x128 weight blocks + 8 bias/pad rows


def _round_up(x, m):
    return (x + m - 1) // m * m


def _jitter_kernel(S, A, neg_max, pos_max, phi_max,
                   state_ref, action_ref, w_ref, out_ref):
    """One batch tile of the Jitter forward pass.

    state_ref : [TB, S]   f32, streamed
    action_ref: [TB, A]   f32, streamed (reused in f32 for the epilogue)
    w_ref     : [392,128] bf16, resident parameter slab:
                  rows   0:S      -> W0_state   (cols 0:H live)
                  rows   S:S+A    -> W0_action  (cols 0:H live)
                  rows 128:256    -> W1         ([0:H, 0:H] live)
                  rows 256:384    -> W2         ([0:H, 0:A] live)
                  rows 384/385/386-> b0 / b1 / b2
    out_ref   : [TB, A]   f32, clamp(action + noise)
    """
    a_f32 = action_ref[...]                                  # [TB, A] f32
    x_s = state_ref[...].astype(jnp.bfloat16)                # [TB, S] bf16
    x_a = a_f32.astype(jnp.bfloat16)                         # [TB, A] bf16

    w0s = w_ref[0:S, :]                                      # [S, 128]
    w0a = w_ref[S:S + A, :]                                  # [A, 128]
    w1 = w_ref[LANE:2 * LANE, :]                             # [128, 128]
    w2 = w_ref[2 * LANE:3 * LANE, :]                         # [128, 128]
    b = w_ref[3 * LANE:3 * LANE + 8, :].astype(jnp.float32)  # [8, 128]

    # hidden layer 0: Linear + ReLU (no concat: split contraction)
    h = (jnp.dot(x_s, w0s, preferred_element_type=jnp.float32)
         + jnp.dot(x_a, w0a, preferred_element_type=jnp.float32)
         + b[0:1, :])
    h = jnp.maximum(h, 0.0)

    # hidden layer 1: Linear + ReLU
    h = jnp.dot(h.astype(jnp.bfloat16), w1,
                preferred_element_type=jnp.float32) + b[1:2, :]
    h = jnp.maximum(h, 0.0)

    # output head: Linear (action cols 0:A), tanh (EUP) and scale in f32
    z = jnp.dot(h.astype(jnp.bfloat16), w2,
                preferred_element_type=jnp.float32) + b[2:3, :]
    noise = phi_max * jnp.tanh(z[:, :A])                     # [TB, A] f32

    out_ref[...] = jnp.clip(a_f32 + noise, neg_max, pos_max).astype(out_ref.dtype)


def pack_params(params, state_dim, action_dim):
    """Pack all weights + biases once into a single resident bf16 slab [392, 128]."""
    S, A = state_dim, action_dim
    H = params["w0"].shape[1]
    assert S + A <= LANE and H <= LANE and A <= LANE

    w = jnp.zeros((W_ROWS, LANE), jnp.float32)
    w = w.at[0:S + A, 0:H].set(params["w0"])                  # rows 0:S / S:S+A
    w = w.at[LANE:LANE + H, 0:H].set(params["w1"])
    w = w.at[2 * LANE:2 * LANE + H, 0:A].set(params["w2"])
    w = w.at[3 * LANE + 0, 0:H].set(params["b0"].reshape(-1))
    w = w.at[3 * LANE + 1, 0:H].set(params["b1"].reshape(-1))
    w = w.at[3 * LANE + 2, 0:A].set(params["b2"].reshape(-1))
    return w.astype(jnp.bfloat16)


@functools.partial(jax.jit, static_argnames=("phi", "max_action", "block_rows"))
def jitter_forward(state, action, w_slab, *, phi=PHI, max_action=MAX_ACTION,
                   block_rows=1024):
    """Runs the Pallas Jitter kernel.  `w_slab` is the output of pack_params."""
    B, S = state.shape
    _, A = action.shape

    B8 = _round_up(B, 8)
    TB = _round_up(min(block_rows, B8), 8)
    # Very large batches: ensure >= 4 grid steps (>= 2 per TC on v7x) while
    # keeping the tile >= ~512 rows so we stay near the HBM roofline.
    if B8 >= 4 * 512:
        TB = min(TB, _round_up(pl.cdiv(B8, 4), 8))
    B_pad = _round_up(B8, TB)

    if B_pad != B:
        state = jnp.zeros((B_pad, S), state.dtype).at[:B].set(state)
        action = jnp.zeros((B_pad, A), action.dtype).at[:B].set(action)

    kernel = functools.partial(
        _jitter_kernel, S, A,
        float(-max_action), float(max_action), float(phi * max_action))

    out = pl.pallas_call(
        kernel,
        out_shape=jax.ShapeDtypeStruct((B_pad, A), jnp.float32),
        grid_spec=pltpu.PrefetchScalarGridSpec(
            num_scalar_prefetch=0,
            grid=(B_pad // TB,),
            in_specs=[
                pl.BlockSpec((TB, S), lambda i: (i, 0)),            # state, streamed
                pl.BlockSpec((TB, A), lambda i: (i, 0)),            # action, streamed
                pl.BlockSpec((W_ROWS, LANE), lambda i: (0, 0)),     # params, resident
            ],
            out_specs=pl.BlockSpec((TB, A), lambda i: (i, 0)),
        ),
        compiler_params=pltpu.CompilerParams(
            dimension_semantics=("parallel",)),                      # v7x: 2 TCs
    )(state, action, w_slab)

    return out[:B]


def init_params(key, state_dim, action_dim, hidden, n_hidden_layers):
    """Deterministic synthetic init of the jitter MLP (n_hidden_layers + 1 Linears)."""
    assert n_hidden_layers == 2, "script hard-codes 2 hidden layers in the kernel"
    k0, k1, k2 = jax.random.split(key, 3)
    in_dim = state_dim + action_dim

    def lin_init(k, fan_in, fan_out):
        scale = 1.0 / jnp.sqrt(jnp.float32(fan_in))
        return jax.random.uniform(k, (fan_in, fan_out), jnp.float32, -scale, scale)

    return {
        "w0": lin_init(k0, in_dim, hidden),
        "b0": jnp.zeros((1, hidden), jnp.float32),
        "w1": lin_init(k1, hidden, hidden),
        "b1": jnp.zeros((1, hidden), jnp.float32),
        "w2": lin_init(k2, hidden, action_dim),
        "b2": jnp.zeros((1, action_dim), jnp.float32),
    }


def jitter_reference(state, action, params, *, phi=PHI, max_action=MAX_ACTION):
    """Pure-JAX f32 reference for correctness checking."""
    sa = jnp.concatenate([state, action], axis=-1)
    h = jnp.maximum(sa @ params["w0"] + params["b0"], 0.0)
    h = jnp.maximum(h @ params["w1"] + params["b1"], 0.0)
    noise = h @ params["w2"] + params["b2"]
    noise = phi * max_action * jnp.tanh(noise)
    return jnp.clip(action + noise, -max_action, max_action)


if __name__ == "__main__":
    key = jax.random.PRNGKey(0)
    k_param, k_state, k_action, k_state2, k_action2 = jax.random.split(key, 5)

    params = init_params(k_param, STATE_DIM, ACTION_DIM, JITTER_FEATURES, JITTER_LAYERS)
    w_slab = pack_params(params, STATE_DIM, ACTION_DIM)   # packed once, reused

    # Small batch (single grid step).
    state = jax.random.normal(k_state, (BATCH, STATE_DIM), jnp.float32)
    action = jnp.tanh(jax.random.normal(k_action, (BATCH, ACTION_DIM), jnp.float32))
    out = jax.block_until_ready(jitter_forward(state, action, w_slab))
    ref = jitter_reference(state, action, params)
    assert out.shape == (BATCH, ACTION_DIM)
    # bf16 MXU operands -> noise error ~1e-3 abs (scaled by phi*max_action=0.05).
    assert jnp.allclose(out, ref, atol=5e-3, rtol=0.0), "mismatch vs reference (small batch)"

    # Larger ragged batch: exercises the batch grid + padding path (BCQ-style
    # many-candidate evaluation flattened into one big batch).
    B2 = 300
    state2 = jax.random.normal(k_state2, (B2, STATE_DIM), jnp.float32)
    action2 = jnp.tanh(jax.random.normal(k_action2, (B2, ACTION_DIM), jnp.float32))
    out2 = jax.block_until_ready(
        jitter_forward(state2, action2, w_slab, block_rows=64))
    ref2 = jitter_reference(state2, action2, params)
    assert out2.shape == (B2, ACTION_DIM)
    assert jnp.allclose(out2, ref2, atol=5e-3, rtol=0.0), "mismatch vs reference (batched grid)"

    print("KERNEL_OK")
</pallas_src>

<mosaic_0001>
module attributes {stable_mosaic.version = 11 : i64} {
  func.func @_jitter_kernel(%arg0: i32, %arg1: memref<8x16xf32, #tpu.memory_space<vmem>>, %arg2: memref<8x8xf32, #tpu.memory_space<vmem>>, %arg3: memref<392x128xbf16, #tpu.memory_space<vmem>>, %arg4: memref<8x8xf32, #tpu.memory_space<vmem>>) attributes {dimension_semantics = [#tpu.dimension_semantics<parallel>], iteration_bounds = array<i64: 1>, scalar_prefetch = 0 : i64, scratch_operands = 0 : i64, tpu.core_type = #tpu.core_type<tc>, window_params = [{transform_indices = @transform_0, window_bounds = array<i64: 8, 16>}, {transform_indices = @transform_1, window_bounds = array<i64: 8, 8>}, {pipeline_mode = #tpu.pipeline_mode<synchronous>, transform_indices = @transform_2, window_bounds = array<i64: 392, 128>}, {transform_indices = @transform_3, window_bounds = array<i64: 8, 8>}]} {
    %c0 = arith.constant 0 : index
    %c0_0 = arith.constant 0 : index
    %0 = vector.load %arg2[%c0, %c0_0] : memref<8x8xf32, #tpu.memory_space<vmem>>, vector<8x8xf32>
    %c0_1 = arith.constant 0 : index
    %c0_2 = arith.constant 0 : index
    %1 = vector.load %arg1[%c0_1, %c0_2] : memref<8x16xf32, #tpu.memory_space<vmem>>, vector<8x16xf32>
    %2 = arith.truncf %1 : vector<8x16xf32> to vector<8x16xbf16>
    %3 = arith.truncf %0 : vector<8x8xf32> to vector<8x8xbf16>
    %c0_3 = arith.constant 0 : index
    %c0_4 = arith.constant 0 : index
    %4 = vector.load %arg3[%c0_3, %c0_4] : memref<392x128xbf16, #tpu.memory_space<vmem>>, vector<16x128xbf16>
    %c16 = arith.constant 16 : index
    %c0_5 = arith.constant 0 : index
    %5 = vector.load %arg3[%c16, %c0_5] : memref<392x128xbf16, #tpu.memory_space<vmem>>, vector<8x128xbf16>
    %c128 = arith.constant 128 : index
    %c0_6 = arith.constant 0 : index
    %6 = vector.load %arg3[%c128, %c0_6] : memref<392x128xbf16, #tpu.memory_space<vmem>>, vector<128x128xbf16>
    %c256 = arith.constant 256 : index
    %c0_7 = arith.constant 0 : index
    %7 = vector.load %arg3[%c256, %c0_7] : memref<392x128xbf16, #tpu.memory_space<vmem>>, vector<128x128xbf16>
    %c384 = arith.constant 384 : index
    %c0_8 = arith.constant 0 : index
    %8 = vector.load %arg3[%c384, %c0_8] : memref<392x128xbf16, #tpu.memory_space<vmem>>, vector<8x128xbf16>
    %9 = arith.extf %8 : vector<8x128xbf16> to vector<8x128xf32>
    %cst = arith.constant dense<0.000000e+00> : vector<8x128xf32>
    %10 = tpu.matmul %2, %4, %cst {dimension_numbers = #tpu.dot_dimension_numbers<[1], [0], [0], [1], [0, 0, 1, 1], [], []>} : vector<8x16xbf16>, vector<16x128xbf16>, vector<8x128xf32> -> vector<8x128xf32>
    %cst_9 = arith.constant dense<0.000000e+00> : vector<8x128xf32>
    %11 = tpu.matmul %3, %5, %cst_9 {dimension_numbers = #tpu.dot_dimension_numbers<[1], [0], [0], [1], [0, 0, 1, 1], [], []>} : vector<8x8xbf16>, vector<8x128xbf16>, vector<8x128xf32> -> vector<8x128xf32>
    %12 = arith.addf %10, %11 : vector<8x128xf32>
    %13 = vector.extract_strided_slice %9 {offsets = [0, 0], sizes = [1, 128], strides = [1, 1]} : vector<8x128xf32> to vector<1x128xf32>
    %14 = vector.broadcast %13 : vector<1x128xf32> to vector<8x128xf32>
    %15 = arith.addf %12, %14 : vector<8x128xf32>
    %cst_10 = arith.constant 0.000000e+00 : f32
    %16 = vector.broadcast %cst_10 : f32 to vector<8x128xf32>
    %17 = arith.maximumf %15, %16 : vector<8x128xf32>
    %18 = arith.truncf %17 : vector<8x128xf32> to vector<8x128xbf16>
    %cst_11 = arith.constant dense<0.000000e+00> : vector<8x128xf32>
    %19 = tpu.matmul %18, %6, %cst_11 {dimension_numbers = #tpu.dot_dimension_numbers<[1], [0], [0], [1], [0, 0, 1, 1], [], []>} : vector<8x128xbf16>, vector<128x128xbf16>, vector<8x128xf32> -> vector<8x128xf32>
    %20 = vector.extract_strided_slice %9 {offsets = [1, 0], sizes = [1, 128], strides = [1, 1]} : vector<8x128xf32> to vector<1x128xf32>
    %21 = vector.broadcast %20 : vector<1x128xf32> to vector<8x128xf32>
    %22 = arith.addf %19, %21 : vector<8x128xf32>
    %cst_12 = arith.constant 0.000000e+00 : f32
    %23 = vector.broadcast %cst_12 : f32 to vector<8x128xf32>
    %24 = arith.maximumf %22, %23 : vector<8x128xf32>
    %25 = arith.truncf %24 : vector<8x128xf32> to vector<8x128xbf16>
    %cst_13 = arith.constant dense<0.000000e+00> : vector<8x128xf32>
    %26 = tpu.matmul %25, %7, %cst_13 {dimension_numbers = #tpu.dot_dimension_numbers<[1], [0], [0], [1], [0, 0, 1, 1], [], []>} : vector<8x128xbf16>, vector<128x128xbf16>, vector<8x128xf32> -> vector<8x128xf32>
    %27 = vector.extract_strided_slice %9 {offsets = [2, 0], sizes = [1, 128], strides = [1, 1]} : vector<8x128xf32> to vector<1x128xf32>
    %28 = vector.broadcast %27 : vector<1x128xf32> to vector<8x128xf32>
    %29 = arith.addf %26, %28 : vector<8x128xf32>
    %30 = vector.extract_strided_slice %29 {offsets = [0, 0], sizes = [8, 8], strides = [1, 1]} : vector<8x128xf32> to vector<8x8xf32>
    %31 = math.tanh %30 : vector<8x8xf32>
    %cst_14 = arith.constant 5.000000e-02 : f32
    %32 = vector.broadcast %cst_14 : f32 to vector<8x8xf32>
    %33 = arith.mulf %32, %31 : vector<8x8xf32>
    %34 = arith.addf %0, %33 : vector<8x8xf32>
    %cst_15 = arith.constant -1.000000e+00 : f32
    %cst_16 = arith.constant 1.000000e+00 : f32
    %35 = vector.broadcast %cst_15 : f32 to vector<8x8xf32>
    %36 = arith.maximumf %35, %34 : vector<8x8xf32>
    %37 = vector.broadcast %cst_16 : f32 to vector<8x8xf32>
    %38 = arith.minimumf %37, %36 : vector<8x8xf32>
    %c0_17 = arith.constant 0 : index
    %c0_18 = arith.constant 0 : index
    %39 = vector.load %arg4[%c0_17, %c0_18] : memref<8x8xf32, #tpu.memory_space<vmem>>, vector<8x8xf32>
    tpu.vector_store %arg4[%c0_17, %c0_18], %38 {strides = array<i32>} : memref<8x8xf32, #tpu.memory_space<vmem>>, vector<8x8xf32>,
    return
  }
  func.func @transform_0(%arg0: i32) -> (i32, i32) {
    %c0_i32 = arith.constant 0 : i32
    %c0_i32_0 = arith.constant 0 : i32
    return %arg0, %c0_i32 : i32, i32
  }
  func.func @transform_1(%arg0: i32) -> (i32, i32) {
    %c0_i32 = arith.constant 0 : i32
    %c0_i32_0 = arith.constant 0 : i32
    return %arg0, %c0_i32 : i32, i32
  }
  func.func @transform_2(%arg0: i32) -> (i32, i32) {
    %c0_i32 = arith.constant 0 : i32
    %c0_i32_0 = arith.constant 0 : i32
    %c0_i32_1 = arith.constant 0 : i32
    return %c0_i32, %c0_i32_0 : i32, i32
  }
  func.func @transform_3(%arg0: i32) -> (i32, i32) {
    %c0_i32 = arith.constant 0 : i32
    %c0_i32_0 = arith.constant 0 : i32
    return %arg0, %c0_i32 : i32, i32
  }
}

</mosaic_0001>

<llo_original>
// kernel: jitter_forward.1
$region0: #{jitter_forward.1}
  #allocation0 [shape = 'u32[]', space=smem, size = 0x4, offset = 0x4, fixed_abs, tag = 'smem constant byte address 0x4 - core index']
  #allocation1 [shape = 'u32[144,128]{1,0:T(1,128)}', space=vmem, size = 0x12000, scoped, tag = 'internal scratch']
  %s0 = inlined_call_operand.hbm [shape: f32[8,16], index: 0, kind: input, shape index: {}]
  %s1 = inlined_call_operand.hbm [shape: f32[8,8], index: 1, kind: input, shape index: {}]
  %s2 = inlined_call_operand.hbm [shape: bf16[392,128], index: 2, kind: input, shape index: {}]
  %s3 = inlined_call_operand.hbm [shape: f32[8,8], index: 3, kind: output, shape index: {}]
  %s4 = sld [smem:[#allocation0]]
  $region34: #{jitter_forward.1} parent=0
    _
  %s6 = ssub.s32 1, %s4
  %s7 = scalar_select 0, %s6, %s4
  $region1: #{jitter_forward.1} parent=0
    #allocation2 [shape = 'u8[4096]{0}', space=vmem, size = 0x1000, scoped, tag = 'input window, operand 0, single buffered']
    #allocation3 [shape = 's32[1]{0}', space=sflag, size = 0x4, scoped, tag = 'scoped memory for jitter_forward.1']
    #allocation4 [shape = 's32[1]{0}', space=sflag, size = 0x4, scoped, tag = 'scoped memory for jitter_forward.1']
    #allocation5 [shape = 'u8[4096]{0}', space=vmem, size = 0x1000, scoped, tag = 'input window, operand 1, single buffered']
    #allocation6 [shape = 's32[1]{0}', space=sflag, size = 0x4, scoped, tag = 'scoped memory for jitter_forward.1']
    #allocation7 [shape = 'u8[100352]{0}', space=vmem, size = 0x18800, scoped, tag = 'input window, operand 2, single buffered']
    #allocation8 [shape = 'u8[4096]{0}', space=vmem, size = 0x1000, scoped, tag = 'output window, operand 0, single buffered']
    %8 = vsyncpa [#allocation3], 0
    %9 = vsyncpa [#allocation6], 0
    %10 = vsyncpa [#allocation4], 0
    // Predicated region
    $region2: #{jitter_forward.1} parent=1 // pred_check
      _
    $region3: #{jitter_forward.1} parent=1 // pred_check_branch
      %12 = sbr.rel (0) target = $region5
    $region4: #{jitter_forward.1} parent=1 // pred_region
      %s14 = ssub.s32 128, 128
      %15 = vsyncadd [#allocation3], %s14
      %s17 = sshll.u32 [#allocation2], 4
      %s18 = int_to_ptr.vmem [resolvable:$true] %s17
      %20 = dma.hbm_to_vmem [thread:$0]  %s0, 128, %s18, [#allocation3]
    $region5: #{jitter_forward.1} parent=1 // pred_fallthru
      _
    // Predicated region
    $region6: #{jitter_forward.1} parent=1 // pred_check
      _
    $region7: #{jitter_forward.1} parent=1 // pred_check_branch
      %22 = sbr.rel (0) target = $region9
    $region8: #{jitter_forward.1} parent=1 // pred_region
      %s24 = ssub.s32 128, 128
      %25 = vsyncadd [#allocation6], %s24
      %s27 = sshll.u32 [#allocation5], 4
      %s28 = int_to_ptr.vmem [resolvable:$true] %s27
      %30 = dma.hbm_to_vmem [thread:$0]  %s1, 128, %s28, [#allocation6]
    $region9: #{jitter_forward.1} parent=1 // pred_fallthru
      _
    // Predicated region
    $region10: #{jitter_forward.1} parent=1 // pred_check
      _
    $region11: #{jitter_forward.1} parent=1 // pred_check_branch
      %32 = sbr.rel (0) target = $region13
    $region12: #{jitter_forward.1} parent=1 // pred_region
      %s34 = ssub.s32 3136, 3136
      %35 = vsyncadd [#allocation6], %s34
      %s36 = sshll.u32 [#allocation7], 4
      %s37 = int_to_ptr.vmem [resolvable:$true] %s36
      %42 = dma.hbm_to_vmem [thread:$0]  %s2, 3136, %s37, [#allocation6], 64, 64, 4
    $region13: #{jitter_forward.1} parent=1 // pred_fallthru
      _
    // Predicated region
    $region14: #{jitter_forward.1} parent=1 // pred_check
      _
    $region15: #{jitter_forward.1} parent=1 // pred_check_branch
      %44 = sbr.rel (0) target = $region17
    $region16: #{jitter_forward.1} parent=1 // pred_region
      %45 = dma.done [#allocation3], 128
    $region17: #{jitter_forward.1} parent=1 // pred_fallthru
      _
    // Predicated region
    $region18: #{jitter_forward.1} parent=1 // pred_check
      _
    $region19: #{jitter_forward.1} parent=1 // pred_check_branch
      %47 = sbr.rel (0) target = $region21
    $region20: #{jitter_forward.1} parent=1 // pred_region
      %48 = dma.done [#allocation6], 128
    $region21: #{jitter_forward.1} parent=1 // pred_fallthru
      _
    // Predicated region
    $region22: #{jitter_forward.1} parent=1 // pred_check
      _
    $region23: #{jitter_forward.1} parent=1 // pred_check_branch
      %50 = sbr.rel (0) target = $region25
    $region24: #{jitter_forward.1} parent=1 // pred_region
      %51 = dma.done [#allocation6], 3136
    $region25: #{jitter_forward.1} parent=1 // pred_fallthru
      _
    %v53 = vld [vmem:[#allocation5] sm:$0xff]
    %v54 = vld [vmem:[#allocation2] sm:$0xff]
    %v55 = vpack.c.bf16 %v54, %v54
    %v56 = vpack.c.bf16 %v53, %v53
    %v57 = vld [vmem:[#allocation7] sm:$0xf]
    %v58 = vld [vmem:[#allocation7 + $0x4] sm:$0xf]
    %v59 = vld [vmem:[#allocation7 + $0x8] sm:$0xf]
    %v60 = vld [vmem:[#allocation7 + $0x40] sm:$0xf]
    %v61 = vld [vmem:[#allocation7 + $0x44] sm:$0xf]
    %v62 = vld [vmem:[#allocation7 + $0x48] sm:$0xf]
    %v63 = vld [vmem:[#allocation7 + $0x4c] sm:$0xf]
    %v64 = vld [vmem:[#allocation7 + $0x50] sm:$0xf]
    %v65 = vld [vmem:[#allocation7 + $0x54] sm:$0xf]
    %v66 = vld [vmem:[#allocation7 + $0x58] sm:$0xf]
    %v67 = vld [vmem:[#allocation7 + $0x5c] sm:$0xf]
    %v68 = vld [vmem:[#allocation7 + $0x60] sm:$0xf]
    %v69 = vld [vmem:[#allocation7 + $0x64] sm:$0xf]
    %v70 = vld [vmem:[#allocation7 + $0x68] sm:$0xf]
    %v71 = vld [vmem:[#allocation7 + $0x6c] sm:$0xf]
    %v72 = vld [vmem:[#allocation7 + $0x70] sm:$0xf]
    %v73 = vld [vmem:[#allocation7 + $0x74] sm:$0xf]
    %v74 = vld [vmem:[#allocation7 + $0x78] sm:$0xf]
    %v75 = vld [vmem:[#allocation7 + $0x7c] sm:$0xf]
    %v76 = vld [vmem:[#allocation7 + $0x80] sm:$0xf]
    %v77 = vld [vmem:[#allocation7 + $0x84] sm:$0xf]
    %v78 = vld [vmem:[#allocation7 + $0x88] sm:$0xf]
    %v79 = vld [vmem:[#allocation7 + $0x8c] sm:$0xf]
    %v80 = vld [vmem:[#allocation7 + $0x90] sm:$0xf]
    %v81 = vld [vmem:[#allocation7 + $0x94] sm:$0xf]
    %v82 = vld [vmem:[#allocation7 + $0x98] sm:$0xf]
    %v83 = vld [vmem:[#allocation7 + $0x9c] sm:$0xf]
    %v84 = vld [vmem:[#allocation7 + $0xa0] sm:$0xf]
    %v85 = vld [vmem:[#allocation7 + $0xa4] sm:$0xf]
    %v86 = vld [vmem:[#allocation7 + $0xa8] sm:$0xf]
    %v87 = vld [vmem:[#allocation7 + $0xac] sm:$0xf]
    %v88 = vld [vmem:[#allocation7 + $0xb0] sm:$0xf]
    %v89 = vld [vmem:[#allocation7 + $0xb4] sm:$0xf]
    %v90 = vld [vmem:[#allocation7 + $0xb8] sm:$0xf]
    %v91 = vld [vmem:[#allocation7 + $0xbc] sm:$0xf]
    %v92 = vld [vmem:[#allocation7 + $0xc0] sm:$0xf]
    %v93 = vunpack.c.l.bf16 %v92
    %vm94 = vcmask 64512
    %v96 = vsel %vm94, %v56, 0
    %vm98 = vcmask 1043456
    %v100 = vsel %vm98, %v59, 0
    %102 = vmatprep.subr.bf16.mxu0 0
    %103 = vmatpush1.bf16.msra.mxu0 %v100
    %104 = vmatprep.subr.bf16.mxu0 0
    %105 = vmatpush1.bf16.msra.mxu0 0
    %106 = vmatprep.subr.bf16.mxu0 0
    %107 = vmatpush1.bf16.msra.mxu0 0
    %108 = vmatprep.subr.bf16.mxu0 0
    %109 = vmatpush1.bf16.msra.mxu0 0
    %110 = vmatprep.subr.bf16.mxu0 0
    %111 = vmatpush1.bf16.msra.mxu0 0
    %112 = vmatprep.subr.bf16.mxu0 0
    %113 = vmatpush1.bf16.msra.mxu0 0
    %114 = vmatprep.subr.bf16.mxu0 0
    %115 = vmatpush1.bf16.msra.mxu0 0
    %116 = vmatprep.subr.bf16.mxu0 0
    %117 = vmatpush1.bf16.msra.mxu0 0
    %118 = vmatprep.subr.bf16.mxu0 0
    %119 = vmatpush1.bf16.msra.mxu0 0
    %120 = vmatprep.subr.bf16.mxu0 0
    %121 = vmatpush1.bf16.msra.mxu0 0
    %122 = vmatprep.subr.bf16.mxu0 0
    %123 = vmatpush1.bf16.msra.mxu0 0
    %124 = vmatprep.subr.bf16.mxu0 0
    %125 = vmatpush1.bf16.msra.mxu0 0
    %126 = vmatprep.subr.bf16.mxu0 0
    %127 = vmatpush1.bf16.msra.mxu0 0
    %128 = vmatprep.subr.bf16.mxu0 0
    %129 = vmatpush1.bf16.msra.mxu0 0
    %130 = vmatprep.subr.bf16.mxu0 0
    %131 = vmatpush1.bf16.msra.mxu0 0
    %132 = vmatprep.subr.bf16.mxu0 0
    %133 = vmatpush1.bf16.msra.mxu0 0
    %134 = vmatprep.mubr.bf16.mxu0 0
    %135 = vmatmul.mubr.bf16.gmra.mrb[0].mxu0 %v96
    %v136 = vpop.f32.mrb[0].mxu0
    %v137 = vadd.f32 0.0, %v136
    %v138 = vpop.f32.mrb[0].mxu0
    %v139 = vpop.f32.mrb[0].mxu0
    %v140 = vpop.f32.mrb[0].mxu0
    %141 = vdwg.mxu0
    %v144 = vunpack.c.l.b16 %v57
    %v145 = vunpack.c.l.b16 %v58
    %v146 = vpack.c.b16 %v145, %v144
    %vm148 = vcmask 130048
    %v150 = vsel %vm148, %v55, 0
    %152 = vmatprep.subr.bf16.mxu0 0
    %153 = vmatpush1.bf16.msra.mxu0 %v146
    %154 = vmatprep.subr.bf16.mxu0 0
    %155 = vmatpush1.bf16.msra.mxu0 0
    %156 = vmatprep.subr.bf16.mxu0 0
    %157 = vmatpush1.bf16.msra.mxu0 0
    %158 = vmatprep.subr.bf16.mxu0 0
    %159 = vmatpush1.bf16.msra.mxu0 0
    %160 = vmatprep.subr.bf16.mxu0 0
    %161 = vmatpush1.bf16.msra.mxu0 0
    %162 = vmatprep.subr.bf16.mxu0 0
    %163 = vmatpush1.bf16.msra.mxu0 0
    %164 = vmatprep.subr.bf16.mxu0 0
    %165 = vmatpush1.bf16.msra.mxu0 0
    %166 = vmatprep.subr.bf16.mxu0 0
    %167 = vmatpush1.bf16.msra.mxu0 0
    %168 = vmatprep.subr.bf16.mxu0 0
    %169 = vmatpush1.bf16.msra.mxu0 0
    %170 = vmatprep.subr.bf16.mxu0 0
    %171 = vmatpush1.bf16.msra.mxu0 0
    %172 = vmatprep.subr.bf16.mxu0 0
    %173 = vmatpush1.bf16.msra.mxu0 0
    %174 = vmatprep.subr.bf16.mxu0 0
    %175 = vmatpush1.bf16.msra.mxu0 0
    %176 = vmatprep.subr.bf16.mxu0 0
    %177 = vmatpush1.bf16.msra.mxu0 0
    %178 = vmatprep.subr.bf16.mxu0 0
    %179 = vmatpush1.bf16.msra.mxu0 0
    %180 = vmatprep.subr.bf16.mxu0 0
    %181 = vmatpush1.bf16.msra.mxu0 0
    %182 = vmatprep.subr.bf16.mxu0 0
    %183 = vmatpush1.bf16.msra.mxu0 0
    %184 = vmatprep.mubr.bf16.mxu0 0
    %185 = vmatmul.mubr.bf16.gmra.mrb[0].mxu0 %v150
    %v186 = vpop.f32.mrb[0].mxu0
    %v187 = vadd.f32 %v137, %v186
    %v188 = vpop.f32.mrb[0].mxu0
    %v189 = vpop.f32.mrb[0].mxu0
    %v190 = vpop.f32.mrb[0].mxu0
    %191 = vdwg.mxu0
    %v192 = vlaneseq
    %v193 = vshrl.u32 %v192, 7
    %v194 = vsub.s32 0, %v193
    %v195 = vrot.slane %v93, %v194
    %v196 = vadd.f32 %v187, %v195
    %v197 = vmax.f32 %v196, 0.0
    %v198 = vpack.c.bf16 %v197, %v197
    %v199 = vlaneseq
    %v200 = vshrl.u32 %v199, 7
    %v201 = vsub.s32 1, %v200
    %v202 = vrot.slane %v93, %v201
    %v219 = vunpack.c.l.b16 %v60
    %v220 = vunpack.c.l.b16 %v61
    %v221 = vunpack.c.l.b16 %v62
    %v222 = vunpack.c.l.b16 %v63
    %v223 = vunpack.c.l.b16 %v64
    %v224 = vunpack.c.l.b16 %v65
    %v225 = vunpack.c.l.b16 %v66
    %v226 = vunpack.c.l.b16 %v67
    %v227 = vunpack.c.l.b16 %v68
    %v228 = vunpack.c.l.b16 %v69
    %v229 = vunpack.c.l.b16 %v70
    %v230 = vunpack.c.l.b16 %v71
    %v231 = vunpack.c.l.b16 %v72
    %v232 = vunpack.c.l.b16 %v73
    %v233 = vunpack.c.l.b16 %v74
    %v234 = vunpack.c.l.b16 %v75
    %v235 = vpack.c.b16 %v220, %v219
    %v236 = vpack.c.b16 %v222, %v221
    %v237 = vpack.c.b16 %v224, %v223
    %v238 = vpack.c.b16 %v226, %v225
    %v239 = vpack.c.b16 %v228, %v227
    %v240 = vpack.c.b16 %v230, %v229
    %v241 = vpack.c.b16 %v232, %v231
    %v242 = vpack.c.b16 %v234, %v233
    %251 = vmatprep.subr.bf16.mxu0 0
    %252 = vmatpush1.bf16.msra.mxu0 %v235
    %253 = vmatprep.subr.bf16.mxu0 0
    %254 = vmatpush1.bf16.msra.mxu0 %v236
    %255 = vmatprep.subr.bf16.mxu0 0
    %256 = vmatpush1.bf16.msra.mxu0 %v237
    %257 = vmatprep.subr.bf16.mxu0 0
    %258 = vmatpush1.bf16.msra.mxu0 %v238
    %259 = vmatprep.subr.bf16.mxu0 0
    %260 = vmatpush1.bf16.msra.mxu0 %v239
    %261 = vmatprep.subr.bf16.mxu0 0
    %262 = vmatpush1.bf16.msra.mxu0 %v240
    %263 = vmatprep.subr.bf16.mxu0 0
    %264 = vmatpush1.bf16.msra.mxu0 %v241
    %265 = vmatprep.subr.bf16.mxu0 0
    %266 = vmatpush1.bf16.msra.mxu0 %v242
    %267 = vmatprep.subr.bf16.mxu0 0
    %268 = vmatpush1.bf16.msra.mxu0 0
    %269 = vmatprep.subr.bf16.mxu0 0
    %270 = vmatpush1.bf16.msra.mxu0 0
    %271 = vmatprep.subr.bf16.mxu0 0
    %272 = vmatpush1.bf16.msra.mxu0 0
    %273 = vmatprep.subr.bf16.mxu0 0
    %274 = vmatpush1.bf16.msra.mxu0 0
    %275 = vmatprep.subr.bf16.mxu0 0
    %276 = vmatpush1.bf16.msra.mxu0 0
    %277 = vmatprep.subr.bf16.mxu0 0
    %278 = vmatpush1.bf16.msra.mxu0 0
    %279 = vmatprep.subr.bf16.mxu0 0
    %280 = vmatpush1.bf16.msra.mxu0 0
    %281 = vmatprep.subr.bf16.mxu0 0
    %282 = vmatpush1.bf16.msra.mxu0 0
    %283 = vmatprep.mubr.bf16.mxu0 0
    %284 = vmatmul.mubr.bf16.gmra.mrb[0].mxu0 %v198
    %v285 = vpop.f32.mrb[0].mxu0
    %v286 = vadd.f32 %v202, %v285
    %v287 = vpop.f32.mrb[0].mxu0
    %v288 = vpop.f32.mrb[0].mxu0
    %v289 = vpop.f32.mrb[0].mxu0
    %290 = vdwg.mxu0
    %v291 = vmax.f32 %v286, 0.0
    %v292 = vpack.c.bf16 %v291, %v291
    %v293 = vlaneseq
    %v294 = vshrl.u32 %v293, 7
    %v295 = vsub.s32 2, %v294
    %v296 = vrot.slane %v93, %v295
    %v313 = vunpack.c.l.b16 %v76
    %v314 = vunpack.c.l.b16 %v77
    %v315 = vunpack.c.l.b16 %v78
    %v316 = vunpack.c.l.b16 %v79
    %v317 = vunpack.c.l.b16 %v80
    %v318 = vunpack.c.l.b16 %v81
    %v319 = vunpack.c.l.b16 %v82
    %v320 = vunpack.c.l.b16 %v83
    %v321 = vunpack.c.l.b16 %v84
    %v322 = vunpack.c.l.b16 %v85
    %v323 = vunpack.c.l.b16 %v86
    %v324 = vunpack.c.l.b16 %v87
    %v325 = vunpack.c.l.b16 %v88
    %v326 = vunpack.c.l.b16 %v89
    %v327 = vunpack.c.l.b16 %v90
    %v328 = vunpack.c.l.b16 %v91
    %v329 = vpack.c.b16 %v314, %v313
    %v330 = vpack.c.b16 %v316, %v315
    %v331 = vpack.c.b16 %v318, %v317
    %v332 = vpack.c.b16 %v320, %v319
    %v333 = vpack.c.b16 %v322, %v321
    %v334 = vpack.c.b16 %v324, %v323
    %v335 = vpack.c.b16 %v326, %v325
    %v336 = vpack.c.b16 %v328, %v327
    %345 = vmatprep.subr.bf16.mxu0 0
    %346 = vmatpush1.bf16.msra.mxu0 %v329
    %347 = vmatprep.subr.bf16.mxu0 0
    %348 = vmatpush1.bf16.msra.mxu0 %v330
    %349 = vmatprep.subr.bf16.mxu0 0
    %350 = vmatpush1.bf16.msra.mxu0 %v331
    %351 = vmatprep.subr.bf16.mxu0 0
    %352 = vmatpush1.bf16.msra.mxu0 %v332
    %353 = vmatprep.subr.bf16.mxu0 0
    %354 = vmatpush1.bf16.msra.mxu0 %v333
    %355 = vmatprep.subr.bf16.mxu0 0
    %356 = vmatpush1.bf16.msra.mxu0 %v334
    %357 = vmatprep.subr.bf16.mxu0 0
    %358 = vmatpush1.bf16.msra.mxu0 %v335
    %359 = vmatprep.subr.bf16.mxu0 0
    %360 = vmatpush1.bf16.msra.mxu0 %v336
    %361 = vmatprep.subr.bf16.mxu0 0
    %362 = vmatpush1.bf16.msra.mxu0 0
    %363 = vmatprep.subr.bf16.mxu0 0
    %364 = vmatpush1.bf16.msra.mxu0 0
    %365 = vmatprep.subr.bf16.mxu0 0
    %366 = vmatpush1.bf16.msra.mxu0 0
    %367 = vmatprep.subr.bf16.mxu0 0
    %368 = vmatpush1.bf16.msra.mxu0 0
    %369 = vmatprep.subr.bf16.mxu0 0
    %370 = vmatpush1.bf16.msra.mxu0 0
    %371 = vmatprep.subr.bf16.mxu0 0
    %372 = vmatpush1.bf16.msra.mxu0 0
    %373 = vmatprep.subr.bf16.mxu0 0
    %374 = vmatpush1.bf16.msra.mxu0 0
    %375 = vmatprep.subr.bf16.mxu0 0
    %376 = vmatpush1.bf16.msra.mxu0 0
    %377 = vmatprep.mubr.bf16.mxu0 0
    %378 = vmatmul.mubr.bf16.gmra.mrb[0].mxu0 %v292
    %v379 = vpop.f32.mrb[0].mxu0
    %v380 = vadd.f32 %v296, %v379
    %v381 = vpop.f32.mrb[0].mxu0
    %v382 = vpop.f32.mrb[0].mxu0
    %v383 = vpop.f32.mrb[0].mxu0
    %384 = vdwg.mxu0
    %v385 = vtanh.pop %v380
    %v386 = vmul.f32 %v385, 0.05
    %v387 = vadd.f32 %v53, %v386
    %v388 = vmax.f32 %v387, -1.0
    %v389 = vmin.f32 %v388, 1.0
    %390 = vst.msk [vmem:[#allocation8] sm:$0xff] %vm94, %v389
    // Predicated region
    $region26: #{jitter_forward.1} parent=1 // pred_check
      _
    $region27: #{jitter_forward.1} parent=1 // pred_check_branch
      %392 = sbr.rel (0) target = $region29
    $region28: #{jitter_forward.1} parent=1 // pred_region
      %s394 = ssub.s32 128, 128
      %395 = vsyncadd [#allocation4], %s394
      %s397 = sshll.u32 [#allocation8], 4
      %s398 = int_to_ptr.vmem [resolvable:$true] %s397
      %400 = dma.vmem_to_hbm [thread:$0]  %s398, 128, %s3, [#allocation4]
    $region29: #{jitter_forward.1} parent=1 // pred_fallthru
      _
    // Predicated region
    $region30: #{jitter_forward.1} parent=1 // pred_check
      _
    $region31: #{jitter_forward.1} parent=1 // pred_check_branch
      %402 = sbr.rel (0) target = $region33
    $region32: #{jitter_forward.1} parent=1 // pred_region
      %403 = dma.done [#allocation4], 128
    $region33: #{jitter_forward.1} parent=1 // pred_fallthru
      _
    %404 = vsyncpa [#allocation3], 1
    %405 = vsyncpa [#allocation6], 1
    %406 = vsyncpa [#allocation4], 1

</llo_original>
